<compile_context>
chip_gen: v6e
topology: v6e:2x2x1
jax: 0.10.0
libtpu: 0.0.40
codegen_flags: <defaults>
</compile_context>

<pallas_src>
import jax
import jax.numpy as jnp
from jax.experimental import pallas as pl
from jax.experimental.pallas import tpu as pltpu


def _round_up(x, m):
    return ((x + m - 1) // m) * m


def _num_tensorcores():
    """Best-effort count of TensorCores per chip (v7x -> 2, v5e/v6e -> 1)."""
    try:
        info = pltpu.get_tpu_info()
        for attr in ("num_cores", "tensorcore_count", "num_tensorcores",
                     "cores_per_chip", "num_tensor_cores"):
            v = getattr(info, attr, None)
            if isinstance(v, int) and v > 0:
                return v
    except Exception:
        pass
    try:
        kind = (getattr(jax.devices()[0], "device_kind", "") or "").lower()
        if "v7" in kind:
            return 2
    except Exception:
        pass
    return 1


def _angle_resnet_blocks_kernel(a_ref, w1_ref, w2_ref, b_ref, o_ref):
    """One row tile through K fused resnet blocks.

    a_ref : (tm, dim)      activation row tile (caller dtype, e.g. bf16)
    w1_ref: (K, dim, dim)  W1^T per block, compute dtype (bf16 fast path / f32 exact)
    w2_ref: (K, dim, dim)  W2^T per block
    b_ref : (2K, dim)      rows [b1_0, b2_0, b1_1, b2_1, ...], f32
    o_ref : (tm, dim)
    """
    x = a_ref[...].astype(jnp.float32)            # residual stream stays f32
    mm_dtype = w1_ref.dtype                       # bf16 on the fast path
    num_blocks = w1_ref.shape[0]
    for k in range(num_blocks):                   # K is small & static -> unrolled
        b1 = b_ref[2 * k:2 * k + 1, :]                            # (1, dim) f32
        b2 = b_ref[2 * k + 1:2 * k + 2, :]                        # (1, dim) f32
        # Fused ReLU + cast (single elementwise pass, bf16 where mm_dtype is bf16).
        h = jnp.maximum(x, 0.0).astype(mm_dtype)
        h = jnp.dot(h, w1_ref[k], preferred_element_type=jnp.float32)   # MXU, f32 acc
        # Fused bias-add + ReLU + cast (single pass).
        h = jnp.maximum(h + b1, 0.0).astype(mm_dtype)
        h = jnp.dot(h, w2_ref[k], preferred_element_type=jnp.float32)   # MXU, f32 acc
        x = x + h + b2                                                  # residual (f32)
    o_ref[...] = x.astype(o_ref.dtype)


def prepare_angle_resnet_params(w1_list, b1_list, w2_list, b2_list,
                                compute_dtype=jnp.bfloat16):
    """PyTorch-layout (dim_out, dim_in) weights -> stacked, transposed kernel params.

    Call once at parameter-load time so the transposes/casts are hoisted out of the
    per-forward hot path. compute_dtype=bf16 is the fast path (f32 accumulation);
    use compute_dtype=f32 for exact parity with the PyTorch module numerics.
    """
    w1_t = jnp.stack([jnp.asarray(w, jnp.float32).T for w in w1_list]).astype(compute_dtype)
    w2_t = jnp.stack([jnp.asarray(w, jnp.float32).T for w in w2_list]).astype(compute_dtype)
    rows = []
    for b1, b2 in zip(b1_list, b2_list):
        rows.append(jnp.asarray(b1, jnp.float32))
        rows.append(jnp.asarray(b2, jnp.float32))
    b = jnp.stack(rows)                               # (2K, dim), f32
    return w1_t, w2_t, b


def _pallas_apply(x, w1_t, w2_t, b, *, tm_eff, single_buffer_weights, interpret):
    n_padded, dim = x.shape
    num_blocks = w1_t.shape[0]

    def resident_spec(shape):
        """Constant-index resident input; single-buffered when supported."""
        index_map = lambda i, _ndim=len(shape): (0,) * _ndim
        if single_buffer_weights:
            try:
                return pl.BlockSpec(shape, index_map, pipeline_mode=pl.Buffered(1))
            except Exception:
                pass
        return pl.BlockSpec(shape, index_map)

    grid = (n_padded // tm_eff,)
    return pl.pallas_call(
        _angle_resnet_blocks_kernel,
        out_shape=jax.ShapeDtypeStruct((n_padded, dim), x.dtype),
        grid_spec=pltpu.PrefetchScalarGridSpec(
            num_scalar_prefetch=0,
            grid=grid,
            in_specs=[
                pl.BlockSpec((tm_eff, dim), lambda i: (i, 0)),          # activations
                resident_spec((num_blocks, dim, dim)),                  # W1^T (resident)
                resident_spec((num_blocks, dim, dim)),                  # W2^T (resident)
                resident_spec((2 * num_blocks, dim)),                   # biases (resident)
            ],
            out_specs=pl.BlockSpec((tm_eff, dim), lambda i: (i, 0)),
        ),
        compiler_params=pltpu.CompilerParams(
            dimension_semantics=("parallel",),
        ),
        interpret=interpret,
    )(x, w1_t, w2_t, b)


def angle_resnet_blocks(a, w1_t, w2_t, b, *, tm=2048, interpret=False):
    """Apply K fused AngleResnetBlocks. a: (..., dim); params from prepare_*().

    Output dtype == a.dtype, so pass a bf16 `a` to get bf16 HBM I/O (the kernel is
    HBM-bandwidth bound at dim=128 for small K, so this is ~2x on activation traffic).
    """
    orig_shape = a.shape
    dim = orig_shape[-1]
    x = a.reshape(-1, dim)
    n = x.shape[0]

    # Row tile: as large as requested, multiple of 8, clamped to the 8-padded problem
    # size. Only on multi-TensorCore chips (v7x) do we shrink to manufacture >=4 grid
    # steps for megacore sharding; single-TC chips just need >=2 steps for overlap.
    n_pad8 = _round_up(n, 8)
    tm_eff = max(8, min(_round_up(tm, 8), n_pad8))
    min_steps = 4 if _num_tensorcores() >= 2 else 2
    while tm_eff > 512 and pl.cdiv(n_pad8, tm_eff) < min_steps:
        tm_eff = max(8, _round_up(tm_eff // 2, 8))   # keep the multiple-of-8 invariant

    n_padded = _round_up(n, tm_eff)
    if n_padded != n:
        x = jnp.pad(x, ((0, n_padded - n), (0, 0)))  # extra rows computed & discarded

    try:
        out = _pallas_apply(x, w1_t, w2_t, b, tm_eff=tm_eff,
                            single_buffer_weights=True, interpret=interpret)
    except Exception:
        # Installed jax/Mosaic rejected pl.Buffered(1) -> plain (double-buffered) specs.
        out = _pallas_apply(x, w1_t, w2_t, b, tm_eff=tm_eff,
                            single_buffer_weights=False, interpret=interpret)

    if n_padded != n:
        out = out[:n]
    return out.reshape(orig_shape)


def angle_resnet_block(a, w1, b1, w2, b2, *, tm=2048, compute_dtype=jnp.bfloat16):
    """Single AngleResnetBlock: a + W2 @ relu(W1 @ relu(a) + b1) + b2.

    w1/w2 are PyTorch-layout (dim_out, dim_in); b1/b2 are (dim,).
    compute_dtype=bf16 is a fast path that diverges slightly from f32 PyTorch numerics;
    use compute_dtype=f32 for exact parity. For static parameters prefer
    prepare_angle_resnet_params() + angle_resnet_blocks() so the transpose/cast is
    not re-done every call.
    """
    w1_t, w2_t, b = prepare_angle_resnet_params(
        [w1], [b1], [w2], [b2], compute_dtype=compute_dtype)
    return angle_resnet_blocks(a, w1_t, w2_t, b, tm=tm)


if __name__ == "__main__":
    dim = 128          # c_hidden of the angle resnet (feature axis -> 128 lanes)
    batch, seq = 2, 8  # small shapes; wrapper flattens to N = 16 rows

    key = jax.random.PRNGKey(0)
    ka, kw1, kb1, kw2, kb2, kw3, kw4 = jax.random.split(key, 7)

    a = jax.random.normal(ka, (batch, seq, dim), dtype=jnp.float32)

    # Parameters with the module's shapes: mlp[1] he-normal; mlp[3] final-init is zeros
    # in minifold -> use small nonzero values so both matmuls AND both bias adds are
    # numerically exercised.
    w1 = jax.random.normal(kw1, (dim, dim), jnp.float32) * jnp.sqrt(2.0 / dim)
    b1 = 0.05 * jax.random.normal(kb1, (dim,), jnp.float32)
    w2 = jax.random.normal(kw2, (dim, dim), jnp.float32) * 0.02
    b2 = 0.05 * jax.random.normal(kb2, (dim,), jnp.float32)

    def ref_block(x, wa, ba, wb, bb):
        h = jnp.maximum(x, 0.0)
        h = jnp.dot(h, wa.T, precision=jax.lax.Precision.HIGHEST) + ba
        h = jnp.maximum(h, 0.0)
        h = jnp.dot(h, wb.T, precision=jax.lax.Precision.HIGHEST) + bb
        return x + h

    # 1) f32 compute path — exact module semantics.
    ref1 = ref_block(a.reshape(-1, dim), w1, b1, w2, b2).reshape(a.shape)
    out_f32 = jax.block_until_ready(
        angle_resnet_block(a, w1, b1, w2, b2, compute_dtype=jnp.float32))
    assert out_f32.shape == a.shape and out_f32.dtype == a.dtype
    assert jnp.allclose(out_f32, ref1, atol=2e-3, rtol=2e-3)

    # 2) Fast path — bf16 activation I/O (halves HBM bytes) + bf16 MXU operands,
    #    f32 accumulation/residual inside the kernel.
    a_bf16 = a.astype(jnp.bfloat16)
    out_bf16 = jax.block_until_ready(angle_resnet_block(a_bf16, w1, b1, w2, b2))
    assert out_bf16.shape == a.shape and out_bf16.dtype == jnp.bfloat16
    ref_bf16 = ref_block(a_bf16.astype(jnp.float32).reshape(-1, dim),
                         w1, b1, w2, b2).reshape(a.shape)
    assert jnp.allclose(out_bf16.astype(jnp.float32), ref_bf16, atol=5e-2, rtol=5e-2)

    # 3) Fused stack of 3 consecutive blocks in ONE pallas_call (activations stay in
    #    VMEM across blocks — no HBM round-trips between blocks), bf16 I/O.
    w1s = [w1, jax.random.normal(kw3, (dim, dim), jnp.float32) * jnp.sqrt(2.0 / dim), w1]
    w2s = [w2, jax.random.normal(kw4, (dim, dim), jnp.float32) * 0.02, w2]
    b1s = [b1, b1, b1]
    b2s = [b2, b2, b2]
    w1_t, w2_t, b_stack = prepare_angle_resnet_params(w1s, b1s, w2s, b2s)  # bf16 weights
    out_fused = jax.block_until_ready(angle_resnet_blocks(a_bf16, w1_t, w2_t, b_stack))

    xr = a_bf16.astype(jnp.float32).reshape(-1, dim)
    for wa, ba, wb, bb in zip(w1s, b1s, w2s, b2s):
        xr = ref_block(xr, wa, ba, wb, bb)
    ref3 = xr.reshape(a.shape)
    assert out_fused.shape == a.shape and out_fused.dtype == jnp.bfloat16
    assert jnp.allclose(out_fused.astype(jnp.float32), ref3, atol=1e-1, rtol=1e-1)

    print("KERNEL_OK")
</pallas_src>

<mosaic_0001>
module attributes {stable_mosaic.version = 11 : i64} {
  func.func @_angle_resnet_blocks_kernel(%arg0: i32, %arg1: memref<16x128xf32, #tpu.memory_space<vmem>>, %arg2: memref<1x128x128xf32, #tpu.memory_space<vmem>>, %arg3: memref<1x128x128xf32, #tpu.memory_space<vmem>>, %arg4: memref<2x128xf32, #tpu.memory_space<vmem>>, %arg5: memref<16x128xf32, #tpu.memory_space<vmem>>) attributes {dimension_semantics = [#tpu.dimension_semantics<parallel>], iteration_bounds = array<i64: 1>, scalar_prefetch = 0 : i64, scratch_operands = 0 : i64, tpu.core_type = #tpu.core_type<tc>, window_params = [{transform_indices = @transform_0, window_bounds = array<i64: 16, 128>}, {pipeline_mode = #tpu.pipeline_mode<synchronous>, transform_indices = @transform_1, window_bounds = array<i64: 1, 128, 128>}, {pipeline_mode = #tpu.pipeline_mode<synchronous>, transform_indices = @transform_2, window_bounds = array<i64: 1, 128, 128>}, {pipeline_mode = #tpu.pipeline_mode<synchronous>, transform_indices = @transform_3, window_bounds = array<i64: 2, 128>}, {transform_indices = @transform_4, window_bounds = array<i64: 16, 128>}]} {
    %c0 = arith.constant 0 : index
    %c0_0 = arith.constant 0 : index
    %0 = vector.load %arg1[%c0, %c0_0] : memref<16x128xf32, #tpu.memory_space<vmem>>, vector<16x128xf32>
    %c0_1 = arith.constant 0 : index
    %c0_2 = arith.constant 0 : index
    %1 = vector.load %arg4[%c0_1, %c0_2] : memref<2x128xf32, #tpu.memory_space<vmem>>, vector<1x128xf32>
    %c1 = arith.constant 1 : index
    %c0_3 = arith.constant 0 : index
    %2 = vector.load %arg4[%c1, %c0_3] : memref<2x128xf32, #tpu.memory_space<vmem>>, vector<1x128xf32>
    %cst = arith.constant 0.000000e+00 : f32
    %3 = vector.broadcast %cst : f32 to vector<16x128xf32>
    %4 = arith.maximumf %0, %3 : vector<16x128xf32>
    %c0_4 = arith.constant 0 : index
    %c0_5 = arith.constant 0 : index
    %c0_6 = arith.constant 0 : index
    %5 = vector.load %arg2[%c0_4, %c0_5, %c0_6] : memref<1x128x128xf32, #tpu.memory_space<vmem>>, vector<1x128x128xf32>
    %6 = vector.shape_cast %5 : vector<1x128x128xf32> to vector<128x128xf32>
    %cst_7 = arith.constant dense<0.000000e+00> : vector<16x128xf32>
    %7 = tpu.matmul %4, %6, %cst_7 {dimension_numbers = #tpu.dot_dimension_numbers<[1], [0], [0], [1], [0, 0, 1, 1], [], []>} : vector<16x128xf32>, vector<128x128xf32>, vector<16x128xf32> -> vector<16x128xf32>
    %8 = vector.broadcast %1 : vector<1x128xf32> to vector<16x128xf32>
    %9 = arith.addf %7, %8 : vector<16x128xf32>
    %cst_8 = arith.constant 0.000000e+00 : f32
    %10 = vector.broadcast %cst_8 : f32 to vector<16x128xf32>
    %11 = arith.maximumf %9, %10 : vector<16x128xf32>
    %c0_9 = arith.constant 0 : index
    %c0_10 = arith.constant 0 : index
    %c0_11 = arith.constant 0 : index
    %12 = vector.load %arg3[%c0_9, %c0_10, %c0_11] : memref<1x128x128xf32, #tpu.memory_space<vmem>>, vector<1x128x128xf32>
    %13 = vector.shape_cast %12 : vector<1x128x128xf32> to vector<128x128xf32>
    %cst_12 = arith.constant dense<0.000000e+00> : vector<16x128xf32>
    %14 = tpu.matmul %11, %13, %cst_12 {dimension_numbers = #tpu.dot_dimension_numbers<[1], [0], [0], [1], [0, 0, 1, 1], [], []>} : vector<16x128xf32>, vector<128x128xf32>, vector<16x128xf32> -> vector<16x128xf32>
    %15 = arith.addf %0, %14 : vector<16x128xf32>
    %16 = vector.broadcast %2 : vector<1x128xf32> to vector<16x128xf32>
    %17 = arith.addf %15, %16 : vector<16x128xf32>
    %c0_13 = arith.constant 0 : index
    %c0_14 = arith.constant 0 : index
    %18 = vector.load %arg5[%c0_13, %c0_14] : memref<16x128xf32, #tpu.memory_space<vmem>>, vector<16x128xf32>
    tpu.vector_store %arg5[%c0_13, %c0_14], %17 {strides = array<i32>} : memref<16x128xf32, #tpu.memory_space<vmem>>, vector<16x128xf32>,
    return
  }
  func.func @transform_0(%arg0: i32) -> (i32, i32) {
    %c0_i32 = arith.constant 0 : i32
    %c0_i32_0 = arith.constant 0 : i32
    return %arg0, %c0_i32 : i32, i32
  }
  func.func @transform_1(%arg0: i32) -> (i32, i32, i32) {
    %c0_i32 = arith.constant 0 : i32
    %c0_i32_0 = arith.constant 0 : i32
    %c0_i32_1 = arith.constant 0 : i32
    %c0_i32_2 = arith.constant 0 : i32
    return %c0_i32, %c0_i32_0, %c0_i32_1 : i32, i32, i32
  }
  func.func @transform_2(%arg0: i32) -> (i32, i32, i32) {
    %c0_i32 = arith.constant 0 : i32
    %c0_i32_0 = arith.constant 0 : i32
    %c0_i32_1 = arith.constant 0 : i32
    %c0_i32_2 = arith.constant 0 : i32
    return %c0_i32, %c0_i32_0, %c0_i32_1 : i32, i32, i32
  }
  func.func @transform_3(%arg0: i32) -> (i32, i32) {
    %c0_i32 = arith.constant 0 : i32
    %c0_i32_0 = arith.constant 0 : i32
    %c0_i32_1 = arith.constant 0 : i32
    return %c0_i32, %c0_i32_0 : i32, i32
  }
  func.func @transform_4(%arg0: i32) -> (i32, i32) {
    %c0_i32 = arith.constant 0 : i32
    %c0_i32_0 = arith.constant 0 : i32
    return %arg0, %c0_i32 : i32, i32
  }
}

module attributes {stable_mosaic.version = 11 : i64} {
  func.func @_angle_resnet_blocks_kernel(%arg0: i32, %arg1: memref<16x128xf32, #tpu.memory_space<vmem>>, %arg2: memref<1x128x128xf32, #tpu.memory_space<vmem>>, %arg3: memref<1x128x128xf32, #tpu.memory_space<vmem>>, %arg4: memref<2x128xf32, #tpu.memory_space<vmem>>, %arg5: memref<16x128xf32, #tpu.memory_space<vmem>>) attributes {dimension_semantics = [#tpu.dimension_semantics<parallel>], iteration_bounds = array<i64: 1>, scalar_prefetch = 0 : i64, scratch_operands = 0 : i64, tpu.core_type = #tpu.core_type<tc>, window_params = [{transform_indices = @transform_0, window_bounds = array<i64: 16, 128>}, {pipeline_mode = #tpu.pipeline_mode<synchronous>, transform_indices = @transform_1, window_bounds = array<i64: 1, 128, 128>}, {pipeline_mode = #tpu.pipeline_mode<synchronous>, transform_indices = @transform_2, window_bounds = array<i64: 1, 128, 128>}, {pipeline_mode = #tpu.pipeline_mode<synchronous>, transform_indices = @transform_3, window_bounds = array<i64: 2, 128>}, {transform_indices = @transform_4, window_bounds = array<i64: 16, 128>}]} {
    %c0 = arith.constant 0 : index
    %c0_0 = arith.constant 0 : index
    %0 = vector.load %arg1[%c0, %c0_0] : memref<16x128xf32, #tpu.memory_space<vmem>>, vector<16x128xf32>
    %c0_1 = arith.constant 0 : index
    %c0_2 = arith.constant 0 : index
    %1 = vector.load %arg4[%c0_1, %c0_2] : memref<2x128xf32, #tpu.memory_space<vmem>>, vector<1x128xf32>
    %c1 = arith.constant 1 : index
    %c0_3 = arith.constant 0 : index
    %2 = vector.load %arg4[%c1, %c0_3] : memref<2x128xf32, #tpu.memory_space<vmem>>, vector<1x128xf32>
    %cst = arith.constant 0.000000e+00 : f32
    %3 = vector.broadcast %cst : f32 to vector<16x128xf32>
    %4 = arith.maximumf %0, %3 : vector<16x128xf32>
    %c0_4 = arith.constant 0 : index
    %c0_5 = arith.constant 0 : index
    %c0_6 = arith.constant 0 : index
    %5 = vector.load %arg2[%c0_4, %c0_5, %c0_6] : memref<1x128x128xf32, #tpu.memory_space<vmem>>, vector<1x128x128xf32>
    %6 = vector.shape_cast %5 : vector<1x128x128xf32> to vector<128x128xf32>
    %cst_7 = arith.constant dense<0.000000e+00> : vector<16x128xf32>
    %7 = tpu.matmul %4, %6, %cst_7 {dimension_numbers = #tpu.dot_dimension_numbers<[1], [0], [0], [1], [0, 0, 1, 1], [], []>} : vector<16x128xf32>, vector<128x128xf32>, vector<16x128xf32> -> vector<16x128xf32>
    %8 = vector.broadcast %1 : vector<1x128xf32> to vector<16x128xf32>
    %9 = arith.addf %7, %8 : vector<16x128xf32>
    %cst_8 = arith.constant 0.000000e+00 : f32
    %10 = vector.broadcast %cst_8 : f32 to vector<16x128xf32>
    %11 = arith.maximumf %9, %10 : vector<16x128xf32>
    %c0_9 = arith.constant 0 : index
    %c0_10 = arith.constant 0 : index
    %c0_11 = arith.constant 0 : index
    %12 = vector.load %arg3[%c0_9, %c0_10, %c0_11] : memref<1x128x128xf32, #tpu.memory_space<vmem>>, vector<1x128x128xf32>
    %13 = vector.shape_cast %12 : vector<1x128x128xf32> to vector<128x128xf32>
    %cst_12 = arith.constant dense<0.000000e+00> : vector<16x128xf32>
    %14 = tpu.matmul %11, %13, %cst_12 {dimension_numbers = #tpu.dot_dimension_numbers<[1], [0], [0], [1], [0, 0, 1, 1], [], []>} : vector<16x128xf32>, vector<128x128xf32>, vector<16x128xf32> -> vector<16x128xf32>
    %15 = arith.addf %0, %14 : vector<16x128xf32>
    %16 = vector.broadcast %2 : vector<1x128xf32> to vector<16x128xf32>
    %17 = arith.addf %15, %16 : vector<16x128xf32>
    %c0_13 = arith.constant 0 : index
    %c0_14 = arith.constant 0 : index
    %18 = vector.load %arg5[%c0_13, %c0_14] : memref<16x128xf32, #tpu.memory_space<vmem>>, vector<16x128xf32>
    tpu.vector_store %arg5[%c0_13, %c0_14], %17 {strides = array<i32>} : memref<16x128xf32, #tpu.memory_space<vmem>>, vector<16x128xf32>,
    return
  }
  func.func @transform_0(%arg0: i32) -> (i32, i32) {
    %c0_i32 = arith.constant 0 : i32
    %c0_i32_0 = arith.constant 0 : i32
    return %arg0, %c0_i32 : i32, i32
  }
  func.func @transform_1(%arg0: i32) -> (i32, i32, i32) {
    %c0_i32 = arith.constant 0 : i32
    %c0_i32_0 = arith.constant 0 : i32
    %c0_i32_1 = arith.constant 0 : i32
    %c0_i32_2 = arith.constant 0 : i32
    return %c0_i32, %c0_i32_0, %c0_i32_1 : i32, i32, i32
  }
  func.func @transform_2(%arg0: i32) -> (i32, i32, i32) {
    %c0_i32 = arith.constant 0 : i32
    %c0_i32_0 = arith.constant 0 : i32
    %c0_i32_1 = arith.constant 0 : i32
    %c0_i32_2 = arith.constant 0 : i32
    return %c0_i32, %c0_i32_0, %c0_i32_1 : i32, i32, i32
  }
  func.func @transform_3(%arg0: i32) -> (i32, i32) {
    %c0_i32 = arith.constant 0 : i32
    %c0_i32_0 = arith.constant 0 : i32
    %c0_i32_1 = arith.constant 0 : i32
    return %c0_i32, %c0_i32_0 : i32, i32
  }
  func.func @transform_4(%arg0: i32) -> (i32, i32) {
    %c0_i32 = arith.constant 0 : i32
    %c0_i32_0 = arith.constant 0 : i32
    return %arg0, %c0_i32 : i32, i32
  }
}

</mosaic_0001>

<llo_original>
// kernel: tpu_custom_call.1
$region0: #{tpu_custom_call.1}
  #allocation0 [shape = 'u32[]', space=smem, size = 0x4, offset = 0x4, fixed_abs, tag = 'smem constant byte address 0x4 - core index']
  #allocation1 [shape = 'u32[144,128]{1,0:T(1,128)}', space=vmem, size = 0x12000, scoped, tag = 'internal scratch']
  %s0 = inlined_call_operand.hbm [shape: f32[16,128], index: 0, kind: input, shape index: {}]
  %s1 = inlined_call_operand.hbm [shape: f32[1,128,128], index: 1, kind: input, shape index: {}]
  %s2 = inlined_call_operand.hbm [shape: f32[1,128,128], index: 2, kind: input, shape index: {}]
  %s3 = inlined_call_operand.vmem [shape: f32[2,128], index: 3, kind: input, shape index: {}]
  %s4 = inlined_call_operand.hbm [shape: f32[16,128], index: 4, kind: output, shape index: {}]
  %s5 = sld [smem:[#allocation0]]
  $region38: #{tpu_custom_call.1} parent=0
    _
  %s7 = ssub.s32 1, %s5
  %s8 = scalar_select 0, %s7, %s5
  $region1: #{tpu_custom_call.1} parent=0
    #allocation2 [shape = 'u8[8192]{0}', space=vmem, size = 0x2000, scoped, tag = 'input window, operand 0, single buffered']
    #allocation3 [shape = 's32[1]{0}', space=sflag, size = 0x4, scoped, tag = 'scoped memory for tpu_custom_call.1']
    #allocation4 [shape = 's32[1]{0}', space=sflag, size = 0x4, scoped, tag = 'scoped memory for tpu_custom_call.1']
    #allocation5 [shape = 'u8[65536]{0}', space=vmem, size = 0x10000, scoped, tag = 'input window, operand 1, single buffered']
    #allocation6 [shape = 's32[1]{0}', space=sflag, size = 0x4, scoped, tag = 'scoped memory for tpu_custom_call.1']
    #allocation7 [shape = 'u8[65536]{0}', space=vmem, size = 0x10000, scoped, tag = 'input window, operand 2, single buffered']
    #allocation8 [shape = 'u8[8192]{0}', space=vmem, size = 0x2000, scoped, tag = 'output window, operand 0, single buffered']
    %9 = vsyncpa [#allocation3], 0
    %10 = vsyncpa [#allocation6], 0
    %11 = vsyncpa [#allocation4], 0
    // Predicated region
    $region2: #{tpu_custom_call.1} parent=1 // pred_check
      _
    $region3: #{tpu_custom_call.1} parent=1 // pred_check_branch
      %13 = sbr.rel (0) target = $region5
    $region4: #{tpu_custom_call.1} parent=1 // pred_region
      %s15 = ssub.s32 256, 256
      %16 = vsyncadd [#allocation3], %s15
      %s17 = sshll.u32 [#allocation2], 4
      %s18 = int_to_ptr.vmem [resolvable:$true] %s17
      %23 = dma.hbm_to_vmem [thread:$0]  %s0, 256, %s18, [#allocation3], 128, 128, 8
    $region5: #{tpu_custom_call.1} parent=1 // pred_fallthru
      _
    // Predicated region
    $region6: #{tpu_custom_call.1} parent=1 // pred_check
      _
    $region7: #{tpu_custom_call.1} parent=1 // pred_check_branch
      %25 = sbr.rel (0) target = $region9
    $region8: #{tpu_custom_call.1} parent=1 // pred_region
      %s27 = ssub.s32 2048, 2048
      %28 = vsyncadd [#allocation6], %s27
      %s29 = sshll.u32 [#allocation5], 4
      %s30 = int_to_ptr.vmem [resolvable:$true] %s29
      %35 = dma.hbm_to_vmem [thread:$0]  %s1, 2048, %s30, [#allocation6], 128, 128, 8
    $region9: #{tpu_custom_call.1} parent=1 // pred_fallthru
      _
    // Predicated region
    $region10: #{tpu_custom_call.1} parent=1 // pred_check
      _
    $region11: #{tpu_custom_call.1} parent=1 // pred_check_branch
      %37 = sbr.rel (0) target = $region13
    $region12: #{tpu_custom_call.1} parent=1 // pred_region
      %s39 = ssub.s32 2048, 2048
      %40 = vsyncadd [#allocation6], %s39
      %s41 = sshll.u32 [#allocation7], 4
      %s42 = int_to_ptr.vmem [resolvable:$true] %s41
      %47 = dma.hbm_to_vmem [thread:$0]  %s2, 2048, %s42, [#allocation6], 128, 128, 8
    $region13: #{tpu_custom_call.1} parent=1 // pred_fallthru
      _
    // Predicated region
    $region14: #{tpu_custom_call.1} parent=1 // pred_check
      _
    $region15: #{tpu_custom_call.1} parent=1 // pred_check_branch
      %49 = sbr.rel (0) target = $region17
    $region16: #{tpu_custom_call.1} parent=1 // pred_region
      _
    $region17: #{tpu_custom_call.1} parent=1 // pred_fallthru
      _
    // Predicated region
    $region18: #{tpu_custom_call.1} parent=1 // pred_check
      _
    $region19: #{tpu_custom_call.1} parent=1 // pred_check_branch
      %51 = sbr.rel (0) target = $region21
    $region20: #{tpu_custom_call.1} parent=1 // pred_region
      %52 = dma.done [#allocation3], 256
    $region21: #{tpu_custom_call.1} parent=1 // pred_fallthru
      _
    // Predicated region
    $region22: #{tpu_custom_call.1} parent=1 // pred_check
      _
    $region23: #{tpu_custom_call.1} parent=1 // pred_check_branch
      %54 = sbr.rel (0) target = $region25
    $region24: #{tpu_custom_call.1} parent=1 // pred_region
      %55 = dma.done [#allocation6], 2048
    $region25: #{tpu_custom_call.1} parent=1 // pred_fallthru
      _
    // Predicated region
    $region26: #{tpu_custom_call.1} parent=1 // pred_check
      _
    $region27: #{tpu_custom_call.1} parent=1 // pred_check_branch
      %57 = sbr.rel (0) target = $region29
    $region28: #{tpu_custom_call.1} parent=1 // pred_region
      %58 = dma.done [#allocation6], 2048
    $region29: #{tpu_custom_call.1} parent=1 // pred_fallthru
      _
    %v59 = vld [vmem:[#allocation2] sm:$0xff]
    %v60 = vld [vmem:[#allocation2 + $0x8] sm:$0xff]
    %v61 = vld [vmem:[%s3] sm:$0x1]
    %v62 = vld [vmem:[%s3 + $0x1] sm:$0x1]
    %v63 = vmax.f32 %v59, 0.0
    %v64 = vmax.f32 %v60, 0.0
    %v65 = vld [vmem:[#allocation5] sm:$0xff]
    %v66 = vld [vmem:[#allocation5 + $0x8] sm:$0xff]
    %v67 = vld [vmem:[#allocation5 + $0x10] sm:$0xff]
    %v68 = vld [vmem:[#allocation5 + $0x18] sm:$0xff]
    %v69 = vld [vmem:[#allocation5 + $0x20] sm:$0xff]
    %v70 = vld [vmem:[#allocation5 + $0x28] sm:$0xff]
    %v71 = vld [vmem:[#allocation5 + $0x30] sm:$0xff]
    %v72 = vld [vmem:[#allocation5 + $0x38] sm:$0xff]
    %v73 = vld [vmem:[#allocation5 + $0x40] sm:$0xff]
    %v74 = vld [vmem:[#allocation5 + $0x48] sm:$0xff]
    %v75 = vld [vmem:[#allocation5 + $0x50] sm:$0xff]
    %v76 = vld [vmem:[#allocation5 + $0x58] sm:$0xff]
    %v77 = vld [vmem:[#allocation5 + $0x60] sm:$0xff]
    %v78 = vld [vmem:[#allocation5 + $0x68] sm:$0xff]
    %v79 = vld [vmem:[#allocation5 + $0x70] sm:$0xff]
    %v80 = vld [vmem:[#allocation5 + $0x78] sm:$0xff]
    %v81 = vlaneseq
    %v82 = vshrl.u32 %v81, 7
    %v83 = vsub.s32 0, %v82
    %v84 = vrot.slane %v61, %v83
    %85 = vmatprep.subr.mxu0 0.0
    %86 = vmatpush1.msra.mxu0 %v80
    %87 = vmatprep.subr.mxu0 0.0
    %88 = vmatpush1.msra.mxu0 %v79
    %89 = vmatprep.subr.mxu0 0.0
    %90 = vmatpush1.msra.mxu0 %v78
    %91 = vmatprep.subr.mxu0 0.0
    %92 = vmatpush1.msra.mxu0 %v77
    %93 = vmatprep.subr.mxu0 0.0
    %94 = vmatpush1.msra.mxu0 %v76
    %95 = vmatprep.subr.mxu0 0.0
    %96 = vmatpush1.msra.mxu0 %v75
    %97 = vmatprep.subr.mxu0 0.0
    %98 = vmatpush1.msra.mxu0 %v74
    %99 = vmatprep.subr.mxu0 0.0
    %100 = vmatpush1.msra.mxu0 %v73
    %101 = vmatprep.subr.mxu0 0.0
    %102 = vmatpush1.msra.mxu0 %v72
    %103 = vmatprep.subr.mxu0 0.0
    %104 = vmatpush1.msra.mxu0 %v71
    %105 = vmatprep.subr.mxu0 0.0
    %106 = vmatpush1.msra.mxu0 %v70
    %107 = vmatprep.subr.mxu0 0.0
    %108 = vmatpush1.msra.mxu0 %v69
    %109 = vmatprep.subr.mxu0 0.0
    %110 = vmatpush1.msra.mxu0 %v68
    %111 = vmatprep.subr.mxu0 0.0
    %112 = vmatpush1.msra.mxu0 %v67
    %113 = vmatprep.subr.mxu0 0.0
    %114 = vmatpush1.msra.mxu0 %v66
    %115 = vmatprep.subr.mxu0 0.0
    %116 = vmatpush1.msra.mxu0 %v65
    %117 = vmatprep.subr.mxu0 0.0
    %118 = vmatpush2.msra.mxu0 0.0
    %119 = vmatprep.subr.mxu0 0.0
    %120 = vmatpush2.msra.mxu0 0.0
    %121 = vmatprep.subr.mxu0 0.0
    %122 = vmatpush2.msra.mxu0 0.0
    %123 = vmatprep.subr.mxu0 0.0
    %124 = vmatpush2.msra.mxu0 0.0
    %125 = vmatprep.subr.mxu0 0.0
    %126 = vmatpush2.msra.mxu0 0.0
    %127 = vmatprep.subr.mxu0 0.0
    %128 = vmatpush2.msra.mxu0 0.0
    %129 = vmatprep.subr.mxu0 0.0
    %130 = vmatpush2.msra.mxu0 0.0
    %131 = vmatprep.subr.mxu0 0.0
    %132 = vmatpush2.msra.mxu0 0.0
    %133 = vmatprep.subr.mxu0 0.0
    %134 = vmatpush2.msra.mxu0 0.0
    %135 = vmatprep.subr.mxu0 0.0
    %136 = vmatpush2.msra.mxu0 0.0
    %137 = vmatprep.subr.mxu0 0.0
    %138 = vmatpush2.msra.mxu0 0.0
    %139 = vmatprep.subr.mxu0 0.0
    %140 = vmatpush2.msra.mxu0 0.0
    %141 = vmatprep.subr.mxu0 0.0
    %142 = vmatpush2.msra.mxu0 0.0
    %143 = vmatprep.subr.mxu0 0.0
    %144 = vmatpush2.msra.mxu0 0.0
    %145 = vmatprep.subr.mxu0 0.0
    %146 = vmatpush2.msra.mxu0 0.0
    %147 = vmatprep.subr.mxu0 0.0
    %148 = vmatpush2.msra.mxu0 0.0
    %149 = vmatprep.mubr.f32.mxu0 0.0
    %150 = vmatmul.mubr.f32.gmra.mxu0 %v63
    %v151 = vpop.f32.mrf.mxu0
    %v152 = vadd.f32 %v84, %v151
    %v153 = vpop.f32.mrf.mxu0
    %154 = vmatprep.mubr.f32.mxu0 0.0
    %155 = vmatmul.mubr.f32.gmra.mxu0 %v64
    %v156 = vpop.f32.mrf.mxu0
    %v157 = vadd.f32 %v84, %v156
    %v158 = vpop.f32.mrf.mxu0
    %159 = vdwg.mxu0
    %v160 = vmax.f32 %v152, 0.0
    %v161 = vmax.f32 %v157, 0.0
    %v162 = vld [vmem:[#allocation7] sm:$0xff]
    %v163 = vld [vmem:[#allocation7 + $0x8] sm:$0xff]
    %v164 = vld [vmem:[#allocation7 + $0x10] sm:$0xff]
    %v165 = vld [vmem:[#allocation7 + $0x18] sm:$0xff]
    %v166 = vld [vmem:[#allocation7 + $0x20] sm:$0xff]
    %v167 = vld [vmem:[#allocation7 + $0x28] sm:$0xff]
    %v168 = vld [vmem:[#allocation7 + $0x30] sm:$0xff]
    %v169 = vld [vmem:[#allocation7 + $0x38] sm:$0xff]
    %v170 = vld [vmem:[#allocation7 + $0x40] sm:$0xff]
    %v171 = vld [vmem:[#allocation7 + $0x48] sm:$0xff]
    %v172 = vld [vmem:[#allocation7 + $0x50] sm:$0xff]
    %v173 = vld [vmem:[#allocation7 + $0x58] sm:$0xff]
    %v174 = vld [vmem:[#allocation7 + $0x60] sm:$0xff]
    %v175 = vld [vmem:[#allocation7 + $0x68] sm:$0xff]
    %v176 = vld [vmem:[#allocation7 + $0x70] sm:$0xff]
    %v177 = vld [vmem:[#allocation7 + $0x78] sm:$0xff]
    %178 = vmatprep.subr.mxu0 0.0
    %179 = vmatpush1.msra.mxu0 %v177
    %180 = vmatprep.subr.mxu0 0.0
    %181 = vmatpush1.msra.mxu0 %v176
    %182 = vmatprep.subr.mxu0 0.0
    %183 = vmatpush1.msra.mxu0 %v175
    %184 = vmatprep.subr.mxu0 0.0
    %185 = vmatpush1.msra.mxu0 %v174
    %186 = vmatprep.subr.mxu0 0.0
    %187 = vmatpush1.msra.mxu0 %v173
    %188 = vmatprep.subr.mxu0 0.0
    %189 = vmatpush1.msra.mxu0 %v172
    %190 = vmatprep.subr.mxu0 0.0
    %191 = vmatpush1.msra.mxu0 %v171
    %192 = vmatprep.subr.mxu0 0.0
    %193 = vmatpush1.msra.mxu0 %v170
    %194 = vmatprep.subr.mxu0 0.0
    %195 = vmatpush1.msra.mxu0 %v169
    %196 = vmatprep.subr.mxu0 0.0
    %197 = vmatpush1.msra.mxu0 %v168
    %198 = vmatprep.subr.mxu0 0.0
    %199 = vmatpush1.msra.mxu0 %v167
    %200 = vmatprep.subr.mxu0 0.0
    %201 = vmatpush1.msra.mxu0 %v166
    %202 = vmatprep.subr.mxu0 0.0
    %203 = vmatpush1.msra.mxu0 %v165
    %204 = vmatprep.subr.mxu0 0.0
    %205 = vmatpush1.msra.mxu0 %v164
    %206 = vmatprep.subr.mxu0 0.0
    %207 = vmatpush1.msra.mxu0 %v163
    %208 = vmatprep.subr.mxu0 0.0
    %209 = vmatpush1.msra.mxu0 %v162
    %210 = vmatprep.subr.mxu0 0.0
    %211 = vmatpush2.msra.mxu0 0.0
    %212 = vmatprep.subr.mxu0 0.0
    %213 = vmatpush2.msra.mxu0 0.0
    %214 = vmatprep.subr.mxu0 0.0
    %215 = vmatpush2.msra.mxu0 0.0
    %216 = vmatprep.subr.mxu0 0.0
    %217 = vmatpush2.msra.mxu0 0.0
    %218 = vmatprep.subr.mxu0 0.0
    %219 = vmatpush2.msra.mxu0 0.0
    %220 = vmatprep.subr.mxu0 0.0
    %221 = vmatpush2.msra.mxu0 0.0
    %222 = vmatprep.subr.mxu0 0.0
    %223 = vmatpush2.msra.mxu0 0.0
    %224 = vmatprep.subr.mxu0 0.0
    %225 = vmatpush2.msra.mxu0 0.0
    %226 = vmatprep.subr.mxu0 0.0
    %227 = vmatpush2.msra.mxu0 0.0
    %228 = vmatprep.subr.mxu0 0.0
    %229 = vmatpush2.msra.mxu0 0.0
    %230 = vmatprep.subr.mxu0 0.0
    %231 = vmatpush2.msra.mxu0 0.0
    %232 = vmatprep.subr.mxu0 0.0
    %233 = vmatpush2.msra.mxu0 0.0
    %234 = vmatprep.subr.mxu0 0.0
    %235 = vmatpush2.msra.mxu0 0.0
    %236 = vmatprep.subr.mxu0 0.0
    %237 = vmatpush2.msra.mxu0 0.0
    %238 = vmatprep.subr.mxu0 0.0
    %239 = vmatpush2.msra.mxu0 0.0
    %240 = vmatprep.subr.mxu0 0.0
    %241 = vmatpush2.msra.mxu0 0.0
    %242 = vmatprep.mubr.f32.mxu0 0.0
    %243 = vmatmul.mubr.f32.gmra.mxu0 %v160
    %v244 = vpop.f32.mrf.mxu0
    %v245 = vadd.f32 0.0, %v244
    %v246 = vpop.f32.mrf.mxu0
    %247 = vmatprep.mubr.f32.mxu0 0.0
    %248 = vmatmul.mubr.f32.gmra.mxu0 %v161
    %v249 = vpop.f32.mrf.mxu0
    %v250 = vadd.f32 0.0, %v249
    %v251 = vpop.f32.mrf.mxu0
    %252 = vdwg.mxu0
    %v253 = vadd.f32 %v59, %v245
    %v254 = vadd.f32 %v60, %v250
    %v255 = vlaneseq
    %v256 = vshrl.u32 %v255, 7
    %v257 = vsub.s32 0, %v256
    %v258 = vrot.slane %v62, %v257
    %v259 = vadd.f32 %v253, %v258
    %v260 = vadd.f32 %v254, %v258
    %261 = vst [vmem:[#allocation8] sm:$0xff] %v259
    %262 = vst [vmem:[#allocation8 + $0x8] sm:$0xff] %v260
    // Predicated region
    $region30: #{tpu_custom_call.1} parent=1 // pred_check
      _
    $region31: #{tpu_custom_call.1} parent=1 // pred_check_branch
      %264 = sbr.rel (0) target = $region33
    $region32: #{tpu_custom_call.1} parent=1 // pred_region
      %s266 = ssub.s32 256, 256
      %267 = vsyncadd [#allocation4], %s266
      %s268 = sshll.u32 [#allocation8], 4
      %s269 = int_to_ptr.vmem [resolvable:$true] %s268
      %274 = dma.vmem_to_hbm [thread:$0]  %s269, 256, %s4, [#allocation4], 128, 128, 8
    $region33: #{tpu_custom_call.1} parent=1 // pred_fallthru
      _
    // Predicated region
    $region34: #{tpu_custom_call.1} parent=1 // pred_check
      _
    $region35: #{tpu_custom_call.1} parent=1 // pred_check_branch
      %276 = sbr.rel (0) target = $region37
    $region36: #{tpu_custom_call.1} parent=1 // pred_region
      %277 = dma.done [#allocation4], 256
    $region37: #{tpu_custom_call.1} parent=1 // pred_fallthru
      _
    %278 = vsyncpa [#allocation3], 1
    %279 = vsyncpa [#allocation6], 1
    %280 = vsyncpa [#allocation4], 1

// kernel: tpu_custom_call.1
$region0: #{tpu_custom_call.1}
  #allocation0 [shape = 'u32[]', space=smem, size = 0x4, offset = 0x4, fixed_abs, tag = 'smem constant byte address 0x4 - core index']
  #allocation1 [shape = 'u32[144,128]{1,0:T(1,128)}', space=vmem, size = 0x12000, scoped, tag = 'internal scratch']
  %s0 = inlined_call_operand.hbm [shape: f32[16,128], index: 0, kind: input, shape index: {}]
  %s1 = inlined_call_operand.hbm [shape: f32[1,128,128], index: 1, kind: input, shape index: {}]
  %s2 = inlined_call_operand.hbm [shape: f32[1,128,128], index: 2, kind: input, shape index: {}]
  %s3 = inlined_call_operand.vmem [shape: f32[2,128], index: 3, kind: input, shape index: {}]
  %s4 = inlined_call_operand.hbm [shape: f32[16,128], index: 4, kind: output, shape index: {}]
  %s5 = sld [smem:[#allocation0]]
  $region38: #{tpu_custom_call.1} parent=0
    _
  %s7 = ssub.s32 1, %s5
  %s8 = scalar_select 0, %s7, %s5
  $region1: #{tpu_custom_call.1} parent=0
    #allocation2 [shape = 'u8[8192]{0}', space=vmem, size = 0x2000, scoped, tag = 'input window, operand 0, single buffered']
    #allocation3 [shape = 's32[1]{0}', space=sflag, size = 0x4, scoped, tag = 'scoped memory for tpu_custom_call.1']
    #allocation4 [shape = 's32[1]{0}', space=sflag, size = 0x4, scoped, tag = 'scoped memory for tpu_custom_call.1']
    #allocation5 [shape = 'u8[65536]{0}', space=vmem, size = 0x10000, scoped, tag = 'input window, operand 1, single buffered']
    #allocation6 [shape = 's32[1]{0}', space=sflag, size = 0x4, scoped, tag = 'scoped memory for tpu_custom_call.1']
    #allocation7 [shape = 'u8[65536]{0}', space=vmem, size = 0x10000, scoped, tag = 'input window, operand 2, single buffered']
    #allocation8 [shape = 'u8[8192]{0}', space=vmem, size = 0x2000, scoped, tag = 'output window, operand 0, single buffered']
    %9 = vsyncpa [#allocation3], 0
    %10 = vsyncpa [#allocation6], 0
    %11 = vsyncpa [#allocation4], 0
    // Predicated region
    $region2: #{tpu_custom_call.1} parent=1 // pred_check
      _
    $region3: #{tpu_custom_call.1} parent=1 // pred_check_branch
      %13 = sbr.rel (0) target = $region5
    $region4: #{tpu_custom_call.1} parent=1 // pred_region
      %s15 = ssub.s32 256, 256
      %16 = vsyncadd [#allocation3], %s15
      %s17 = sshll.u32 [#allocation2], 4
      %s18 = int_to_ptr.vmem [resolvable:$true] %s17
      %23 = dma.hbm_to_vmem [thread:$0]  %s0, 256, %s18, [#allocation3], 128, 128, 8
    $region5: #{tpu_custom_call.1} parent=1 // pred_fallthru
      _
    // Predicated region
    $region6: #{tpu_custom_call.1} parent=1 // pred_check
      _
    $region7: #{tpu_custom_call.1} parent=1 // pred_check_branch
      %25 = sbr.rel (0) target = $region9
    $region8: #{tpu_custom_call.1} parent=1 // pred_region
      %s27 = ssub.s32 2048, 2048
      %28 = vsyncadd [#allocation6], %s27
      %s29 = sshll.u32 [#allocation5], 4
      %s30 = int_to_ptr.vmem [resolvable:$true] %s29
      %35 = dma.hbm_to_vmem [thread:$0]  %s1, 2048, %s30, [#allocation6], 128, 128, 8
    $region9: #{tpu_custom_call.1} parent=1 // pred_fallthru
      _
    // Predicated region
    $region10: #{tpu_custom_call.1} parent=1 // pred_check
      _
    $region11: #{tpu_custom_call.1} parent=1 // pred_check_branch
      %37 = sbr.rel (0) target = $region13
    $region12: #{tpu_custom_call.1} parent=1 // pred_region
      %s39 = ssub.s32 2048, 2048
      %40 = vsyncadd [#allocation6], %s39
      %s41 = sshll.u32 [#allocation7], 4
      %s42 = int_to_ptr.vmem [resolvable:$true] %s41
      %47 = dma.hbm_to_vmem [thread:$0]  %s2, 2048, %s42, [#allocation6], 128, 128, 8
    $region13: #{tpu_custom_call.1} parent=1 // pred_fallthru
      _
    // Predicated region
    $region14: #{tpu_custom_call.1} parent=1 // pred_check
      _
    $region15: #{tpu_custom_call.1} parent=1 // pred_check_branch
      %49 = sbr.rel (0) target = $region17
    $region16: #{tpu_custom_call.1} parent=1 // pred_region
      _
    $region17: #{tpu_custom_call.1} parent=1 // pred_fallthru
      _
    // Predicated region
    $region18: #{tpu_custom_call.1} parent=1 // pred_check
      _
    $region19: #{tpu_custom_call.1} parent=1 // pred_check_branch
      %51 = sbr.rel (0) target = $region21
    $region20: #{tpu_custom_call.1} parent=1 // pred_region
      %52 = dma.done [#allocation3], 256
    $region21: #{tpu_custom_call.1} parent=1 // pred_fallthru
      _
    // Predicated region
    $region22: #{tpu_custom_call.1} parent=1 // pred_check
      _
    $region23: #{tpu_custom_call.1} parent=1 // pred_check_branch
      %54 = sbr.rel (0) target = $region25
    $region24: #{tpu_custom_call.1} parent=1 // pred_region
      %55 = dma.done [#allocation6], 2048
    $region25: #{tpu_custom_call.1} parent=1 // pred_fallthru
      _
    // Predicated region
    $region26: #{tpu_custom_call.1} parent=1 // pred_check
      _
    $region27: #{tpu_custom_call.1} parent=1 // pred_check_branch
      %57 = sbr.rel (0) target = $region29
    $region28: #{tpu_custom_call.1} parent=1 // pred_region
      %58 = dma.done [#allocation6], 2048
    $region29: #{tpu_custom_call.1} parent=1 // pred_fallthru
      _
    %v59 = vld [vmem:[#allocation2] sm:$0xff]
    %v60 = vld [vmem:[#allocation2 + $0x8] sm:$0xff]
    %v61 = vld [vmem:[%s3] sm:$0x1]
    %v62 = vld [vmem:[%s3 + $0x1] sm:$0x1]
    %v63 = vmax.f32 %v59, 0.0
    %v64 = vmax.f32 %v60, 0.0
    %v65 = vld [vmem:[#allocation5] sm:$0xff]
    %v66 = vld [vmem:[#allocation5 + $0x8] sm:$0xff]
    %v67 = vld [vmem:[#allocation5 + $0x10] sm:$0xff]
    %v68 = vld [vmem:[#allocation5 + $0x18] sm:$0xff]
    %v69 = vld [vmem:[#allocation5 + $0x20] sm:$0xff]
    %v70 = vld [vmem:[#allocation5 + $0x28] sm:$0xff]
    %v71 = vld [vmem:[#allocation5 + $0x30] sm:$0xff]
    %v72 = vld [vmem:[#allocation5 + $0x38] sm:$0xff]
    %v73 = vld [vmem:[#allocation5 + $0x40] sm:$0xff]
    %v74 = vld [vmem:[#allocation5 + $0x48] sm:$0xff]
    %v75 = vld [vmem:[#allocation5 + $0x50] sm:$0xff]
    %v76 = vld [vmem:[#allocation5 + $0x58] sm:$0xff]
    %v77 = vld [vmem:[#allocation5 + $0x60] sm:$0xff]
    %v78 = vld [vmem:[#allocation5 + $0x68] sm:$0xff]
    %v79 = vld [vmem:[#allocation5 + $0x70] sm:$0xff]
    %v80 = vld [vmem:[#allocation5 + $0x78] sm:$0xff]
    %v81 = vlaneseq
    %v82 = vshrl.u32 %v81, 7
    %v83 = vsub.s32 0, %v82
    %v84 = vrot.slane %v61, %v83
    %85 = vmatprep.subr.mxu0 0.0
    %86 = vmatpush1.msra.mxu0 %v80
    %87 = vmatprep.subr.mxu0 0.0
    %88 = vmatpush1.msra.mxu0 %v79
    %89 = vmatprep.subr.mxu0 0.0
    %90 = vmatpush1.msra.mxu0 %v78
    %91 = vmatprep.subr.mxu0 0.0
    %92 = vmatpush1.msra.mxu0 %v77
    %93 = vmatprep.subr.mxu0 0.0
    %94 = vmatpush1.msra.mxu0 %v76
    %95 = vmatprep.subr.mxu0 0.0
    %96 = vmatpush1.msra.mxu0 %v75
    %97 = vmatprep.subr.mxu0 0.0
    %98 = vmatpush1.msra.mxu0 %v74
    %99 = vmatprep.subr.mxu0 0.0
    %100 = vmatpush1.msra.mxu0 %v73
    %101 = vmatprep.subr.mxu0 0.0
    %102 = vmatpush1.msra.mxu0 %v72
    %103 = vmatprep.subr.mxu0 0.0
    %104 = vmatpush1.msra.mxu0 %v71
    %105 = vmatprep.subr.mxu0 0.0
    %106 = vmatpush1.msra.mxu0 %v70
    %107 = vmatprep.subr.mxu0 0.0
    %108 = vmatpush1.msra.mxu0 %v69
    %109 = vmatprep.subr.mxu0 0.0
    %110 = vmatpush1.msra.mxu0 %v68
    %111 = vmatprep.subr.mxu0 0.0
    %112 = vmatpush1.msra.mxu0 %v67
    %113 = vmatprep.subr.mxu0 0.0
    %114 = vmatpush1.msra.mxu0 %v66
    %115 = vmatprep.subr.mxu0 0.0
    %116 = vmatpush1.msra.mxu0 %v65
    %117 = vmatprep.subr.mxu0 0.0
    %118 = vmatpush2.msra.mxu0 0.0
    %119 = vmatprep.subr.mxu0 0.0
    %120 = vmatpush2.msra.mxu0 0.0
    %121 = vmatprep.subr.mxu0 0.0
    %122 = vmatpush2.msra.mxu0 0.0
    %123 = vmatprep.subr.mxu0 0.0
    %124 = vmatpush2.msra.mxu0 0.0
    %125 = vmatprep.subr.mxu0 0.0
    %126 = vmatpush2.msra.mxu0 0.0
    %127 = vmatprep.subr.mxu0 0.0
    %128 = vmatpush2.msra.mxu0 0.0
    %129 = vmatprep.subr.mxu0 0.0
    %130 = vmatpush2.msra.mxu0 0.0
    %131 = vmatprep.subr.mxu0 0.0
    %132 = vmatpush2.msra.mxu0 0.0
    %133 = vmatprep.subr.mxu0 0.0
    %134 = vmatpush2.msra.mxu0 0.0
    %135 = vmatprep.subr.mxu0 0.0
    %136 = vmatpush2.msra.mxu0 0.0
    %137 = vmatprep.subr.mxu0 0.0
    %138 = vmatpush2.msra.mxu0 0.0
    %139 = vmatprep.subr.mxu0 0.0
    %140 = vmatpush2.msra.mxu0 0.0
    %141 = vmatprep.subr.mxu0 0.0
    %142 = vmatpush2.msra.mxu0 0.0
    %143 = vmatprep.subr.mxu0 0.0
    %144 = vmatpush2.msra.mxu0 0.0
    %145 = vmatprep.subr.mxu0 0.0
    %146 = vmatpush2.msra.mxu0 0.0
    %147 = vmatprep.subr.mxu0 0.0
    %148 = vmatpush2.msra.mxu0 0.0
    %149 = vmatprep.mubr.f32.mxu0 0.0
    %150 = vmatmul.mubr.f32.gmra.mxu0 %v63
    %v151 = vpop.f32.mrf.mxu0
    %v152 = vadd.f32 %v84, %v151
    %v153 = vpop.f32.mrf.mxu0
    %154 = vmatprep.mubr.f32.mxu0 0.0
    %155 = vmatmul.mubr.f32.gmra.mxu0 %v64
    %v156 = vpop.f32.mrf.mxu0
    %v157 = vadd.f32 %v84, %v156
    %v158 = vpop.f32.mrf.mxu0
    %159 = vdwg.mxu0
    %v160 = vmax.f32 %v152, 0.0
    %v161 = vmax.f32 %v157, 0.0
    %v162 = vld [vmem:[#allocation7] sm:$0xff]
    %v163 = vld [vmem:[#allocation7 + $0x8] sm:$0xff]
    %v164 = vld [vmem:[#allocation7 + $0x10] sm:$0xff]
    %v165 = vld [vmem:[#allocation7 + $0x18] sm:$0xff]
    %v166 = vld [vmem:[#allocation7 + $0x20] sm:$0xff]
    %v167 = vld [vmem:[#allocation7 + $0x28] sm:$0xff]
    %v168 = vld [vmem:[#allocation7 + $0x30] sm:$0xff]
    %v169 = vld [vmem:[#allocation7 + $0x38] sm:$0xff]
    %v170 = vld [vmem:[#allocation7 + $0x40] sm:$0xff]
    %v171 = vld [vmem:[#allocation7 + $0x48] sm:$0xff]
    %v172 = vld [vmem:[#allocation7 + $0x50] sm:$0xff]
    %v173 = vld [vmem:[#allocation7 + $0x58] sm:$0xff]
    %v174 = vld [vmem:[#allocation7 + $0x60] sm:$0xff]
    %v175 = vld [vmem:[#allocation7 + $0x68] sm:$0xff]
    %v176 = vld [vmem:[#allocation7 + $0x70] sm:$0xff]
    %v177 = vld [vmem:[#allocation7 + $0x78] sm:$0xff]
    %178 = vmatprep.subr.mxu0 0.0
    %179 = vmatpush1.msra.mxu0 %v177
    %180 = vmatprep.subr.mxu0 0.0
    %181 = vmatpush1.msra.mxu0 %v176
    %182 = vmatprep.subr.mxu0 0.0
    %183 = vmatpush1.msra.mxu0 %v175
    %184 = vmatprep.subr.mxu0 0.0
    %185 = vmatpush1.msra.mxu0 %v174
    %186 = vmatprep.subr.mxu0 0.0
    %187 = vmatpush1.msra.mxu0 %v173
    %188 = vmatprep.subr.mxu0 0.0
    %189 = vmatpush1.msra.mxu0 %v172
    %190 = vmatprep.subr.mxu0 0.0
    %191 = vmatpush1.msra.mxu0 %v171
    %192 = vmatprep.subr.mxu0 0.0
    %193 = vmatpush1.msra.mxu0 %v170
    %194 = vmatprep.subr.mxu0 0.0
    %195 = vmatpush1.msra.mxu0 %v169
    %196 = vmatprep.subr.mxu0 0.0
    %197 = vmatpush1.msra.mxu0 %v168
    %198 = vmatprep.subr.mxu0 0.0
    %199 = vmatpush1.msra.mxu0 %v167
    %200 = vmatprep.subr.mxu0 0.0
    %201 = vmatpush1.msra.mxu0 %v166
    %202 = vmatprep.subr.mxu0 0.0
    %203 = vmatpush1.msra.mxu0 %v165
    %204 = vmatprep.subr.mxu0 0.0
    %205 = vmatpush1.msra.mxu0 %v164
    %206 = vmatprep.subr.mxu0 0.0
    %207 = vmatpush1.msra.mxu0 %v163
    %208 = vmatprep.subr.mxu0 0.0
    %209 = vmatpush1.msra.mxu0 %v162
    %210 = vmatprep.subr.mxu0 0.0
    %211 = vmatpush2.msra.mxu0 0.0
    %212 = vmatprep.subr.mxu0 0.0
    %213 = vmatpush2.msra.mxu0 0.0
    %214 = vmatprep.subr.mxu0 0.0
    %215 = vmatpush2.msra.mxu0 0.0
    %216 = vmatprep.subr.mxu0 0.0
    %217 = vmatpush2.msra.mxu0 0.0
    %218 = vmatprep.subr.mxu0 0.0
    %219 = vmatpush2.msra.mxu0 0.0
    %220 = vmatprep.subr.mxu0 0.0
    %221 = vmatpush2.msra.mxu0 0.0
    %222 = vmatprep.subr.mxu0 0.0
    %223 = vmatpush2.msra.mxu0 0.0
    %224 = vmatprep.subr.mxu0 0.0
    %225 = vmatpush2.msra.mxu0 0.0
    %226 = vmatprep.subr.mxu0 0.0
    %227 = vmatpush2.msra.mxu0 0.0
    %228 = vmatprep.subr.mxu0 0.0
    %229 = vmatpush2.msra.mxu0 0.0
    %230 = vmatprep.subr.mxu0 0.0
    %231 = vmatpush2.msra.mxu0 0.0
    %232 = vmatprep.subr.mxu0 0.0
    %233 = vmatpush2.msra.mxu0 0.0
    %234 = vmatprep.subr.mxu0 0.0
    %235 = vmatpush2.msra.mxu0 0.0
    %236 = vmatprep.subr.mxu0 0.0
    %237 = vmatpush2.msra.mxu0 0.0
    %238 = vmatprep.subr.mxu0 0.0
    %239 = vmatpush2.msra.mxu0 0.0
    %240 = vmatprep.subr.mxu0 0.0
    %241 = vmatpush2.msra.mxu0 0.0
    %242 = vmatprep.mubr.f32.mxu0 0.0
    %243 = vmatmul.mubr.f32.gmra.mxu0 %v160
    %v244 = vpop.f32.mrf.mxu0
    %v245 = vadd.f32 0.0, %v244
    %v246 = vpop.f32.mrf.mxu0
    %247 = vmatprep.mubr.f32.mxu0 0.0
    %248 = vmatmul.mubr.f32.gmra.mxu0 %v161
    %v249 = vpop.f32.mrf.mxu0
    %v250 = vadd.f32 0.0, %v249
    %v251 = vpop.f32.mrf.mxu0
    %252 = vdwg.mxu0
    %v253 = vadd.f32 %v59, %v245
    %v254 = vadd.f32 %v60, %v250
    %v255 = vlaneseq
    %v256 = vshrl.u32 %v255, 7
    %v257 = vsub.s32 0, %v256
    %v258 = vrot.slane %v62, %v257
    %v259 = vadd.f32 %v253, %v258
    %v260 = vadd.f32 %v254, %v258
    %261 = vst [vmem:[#allocation8] sm:$0xff] %v259
    %262 = vst [vmem:[#allocation8 + $0x8] sm:$0xff] %v260
    // Predicated region
    $region30: #{tpu_custom_call.1} parent=1 // pred_check
      _
    $region31: #{tpu_custom_call.1} parent=1 // pred_check_branch
      %264 = sbr.rel (0) target = $region33
    $region32: #{tpu_custom_call.1} parent=1 // pred_region
      %s266 = ssub.s32 256, 256
      %267 = vsyncadd [#allocation4], %s266
      %s268 = sshll.u32 [#allocation8], 4
      %s269 = int_to_ptr.vmem [resolvable:$true] %s268
      %274 = dma.vmem_to_hbm [thread:$0]  %s269, 256, %s4, [#allocation4], 128, 128, 8
    $region33: #{tpu_custom_call.1} parent=1 // pred_fallthru
      _
    // Predicated region
    $region34: #{tpu_custom_call.1} parent=1 // pred_check
      _
    $region35: #{tpu_custom_call.1} parent=1 // pred_check_branch
      %276 = sbr.rel (0) target = $region37
    $region36: #{tpu_custom_call.1} parent=1 // pred_region
      %277 = dma.done [#allocation4], 256
    $region37: #{tpu_custom_call.1} parent=1 // pred_fallthru
      _
    %278 = vsyncpa [#allocation3], 1
    %279 = vsyncpa [#allocation6], 1
    %280 = vsyncpa [#allocation4], 1

</llo_original>
